<compile_context>
chip_gen: v6e
topology: v6e:2x2x1
jax: 0.10.0
libtpu: 0.0.40
codegen_flags: <defaults>
</compile_context>

<pallas_src>
import numpy as np
import jax
import jax.numpy as jnp
from jax import lax
from jax.experimental import pallas as pl
from jax.experimental.pallas import tpu as pltpu

NEG_SLOPE = 0.01  # PyTorch LeakyReLU default


def _leaky_relu(x):
    return jnp.where(x >= 0.0, x, NEG_SLOPE * x)


def _sigmoid(x):
    # Exact identity sigmoid(x) = 0.5*(1 + tanh(x/2)): routes through the EUP
    # tanh slot (idle in the latency-bound recurrence), avoids a VPU divide,
    # and is numerically robust for large |x|.
    return 0.5 * (jnp.tanh(0.5 * x) + 1.0)


# ----------------------------------------------------------------------------
# Kernel 1: fused adjacency-norm + all GCN layers + GRU input transform.
# One graph per grid step ("parallel" -> megacore sharding / both v7x TCs).
# ----------------------------------------------------------------------------
def _make_gcn_gi_kernel(num_layers):
    def kernel(*refs):
        a_ref, x_ref = refs[0], refs[1]
        w_refs = refs[2:2 + num_layers]
        b_refs = refs[2 + num_layers:2 + 2 * num_layers]
        wih_ref = refs[2 + 2 * num_layers]
        bih_ref = refs[3 + 2 * num_layers]
        o_ref = refs[4 + 2 * num_layers]

        # Symmetric "both" normalisation, computed in-register (never stored).
        a = a_ref[0]                                      # (N, N)
        d_in = jnp.sum(a, axis=1, keepdims=True)          # (N, 1)
        d_out = jnp.sum(a, axis=0, keepdims=True)         # (1, N)
        a_norm = (a * lax.rsqrt(jnp.maximum(d_in, 1.0))
                    * lax.rsqrt(jnp.maximum(d_out, 1.0)))

        h = x_ref[0]                                      # (N, f_in)
        for l in range(num_layers):
            w = w_refs[l][0]                              # (f_l, hid)
            b = b_refs[l][0]                              # (1, hid)
            f_in_l, hid_l = w.shape
            if f_in_l < hid_l:
                # Aggregate first: N^2*f_in + N*f_in*hid MXU work.
                h = jnp.dot(jnp.dot(a_norm, h, preferred_element_type=jnp.float32),
                            w, preferred_element_type=jnp.float32) + b
            else:
                # Transform first: N*f_in*hid + N^2*hid MXU work.
                h = jnp.dot(a_norm,
                            jnp.dot(h, w, preferred_element_type=jnp.float32),
                            preferred_element_type=jnp.float32) + b
            h = _leaky_relu(h)

        # Hoisted GRU input transform: gi does not depend on the recurrence,
        # so batch it here on the parallel (cuts) axis.  Lane-dense store.
        o_ref[0] = (jnp.dot(h, wih_ref[...], preferred_element_type=jnp.float32)
                    + bih_ref[...])
    return kernel


def gcn_and_gru_input(adj, feats, gcn_ws, gcn_bs, wih_t, bih):
    cuts, n, f_in = feats.shape
    hid = gcn_ws[0].shape[-1]
    num_layers = len(gcn_ws)

    in_specs = [
        pl.BlockSpec((1, n, n), lambda g: (g, 0, 0)),         # adjacency
        pl.BlockSpec((1, n, f_in), lambda g: (g, 0, 0)),      # features
    ]
    args = [adj, feats]
    for w in gcn_ws:                                          # per-graph weights
        in_specs.append(pl.BlockSpec((1, w.shape[1], hid), lambda g: (g, 0, 0)))
        args.append(w)
    for b in gcn_bs:
        in_specs.append(pl.BlockSpec((1, 1, hid), lambda g: (g, 0, 0)))
        args.append(b)
    # GRU input-to-hidden weights: resident (constant index_map).
    in_specs.append(pl.BlockSpec((hid, 3 * hid), lambda g: (0, 0)))
    args.append(wih_t)
    in_specs.append(pl.BlockSpec((1, 3 * hid), lambda g: (0, 0)))
    args.append(bih)

    return pl.pallas_call(
        _make_gcn_gi_kernel(num_layers),
        out_shape=jax.ShapeDtypeStruct((cuts, n, 3 * hid), jnp.float32),
        grid=(cuts,),
        in_specs=in_specs,
        out_specs=pl.BlockSpec((1, n, 3 * hid), lambda g: (g, 0, 0)),
        compiler_params=pltpu.CompilerParams(dimension_semantics=("parallel",)),
    )(*args)


# ----------------------------------------------------------------------------
# Kernel 2: GRU recurrence with the input transform already applied.
# Whole (T, N, 3H) gi sequence resident in VMEM; single kernel invocation,
# time iterated with an unrolled fori_loop (no per-step pipeline overhead).
# Only gh = h @ W_hh^T remains on the serial critical path.
# ----------------------------------------------------------------------------
def _gru_kernel(gi_ref, wh_ref, bh_ref, o_ref):
    t_steps = gi_ref.shape[0]
    n, hsz = o_ref.shape

    def step(t, h):
        gi = gi_ref[t]                                        # (N, 3H)
        gh = (jnp.dot(h, wh_ref[...], preferred_element_type=jnp.float32)
              + bh_ref[...])
        r = _sigmoid(gi[:, 0:hsz] + gh[:, 0:hsz])
        z = _sigmoid(gi[:, hsz:2 * hsz] + gh[:, hsz:2 * hsz])
        nn_ = jnp.tanh(gi[:, 2 * hsz:3 * hsz] + r * gh[:, 2 * hsz:3 * hsz])
        return (1.0 - z) * nn_ + z * h

    h0 = jnp.zeros((n, hsz), jnp.float32)                     # nn.GRU default h0
    h_last = lax.fori_loop(0, t_steps, step, h0, unroll=True)
    o_ref[...] = h_last                                       # gru_out[-1]


def gru_last_output(gi, wh_t, bh, hid):
    _, n, _ = gi.shape
    # Whole-array VMEM residency (gi is ~73 KiB at these shapes).
    return pl.pallas_call(
        _gru_kernel,
        out_shape=jax.ShapeDtypeStruct((n, hid), jnp.float32),
    )(gi, wh_t, bh)


# ----------------------------------------------------------------------------
# Full GCNGRU forward: two pallas_calls total.
# ----------------------------------------------------------------------------
def gcn_gru_forward(adj, feats, gcn_ws, gcn_bs, w_ih, w_hh, b_ih, b_hh):
    hid = gcn_ws[0].shape[-1]
    wih_t = jnp.transpose(w_ih)                               # (H, 3H)  gates r,z,n
    wh_t = jnp.transpose(w_hh)                                # (H, 3H)
    bih = b_ih.reshape(1, 3 * hid)
    bh = b_hh.reshape(1, 3 * hid)

    gi = gcn_and_gru_input(adj, feats, gcn_ws, gcn_bs, wih_t, bih)
    return gru_last_output(gi, wh_t, bh, hid)


# ----------------------------------------------------------------------------
# Pure-JAX reference (same math as the PyTorch module with DGL GraphConv)
# ----------------------------------------------------------------------------
def reference_forward(adj, feats, gcn_ws, gcn_bs, w_ih, w_hh, b_ih, b_hh):
    cuts, n, _ = feats.shape
    hsz = gcn_ws[0].shape[-1]
    seq = []
    for g in range(cuts):
        a = adj[g]
        inv_in = 1.0 / jnp.sqrt(jnp.maximum(a.sum(axis=1, keepdims=True), 1.0))
        inv_out = 1.0 / jnp.sqrt(jnp.maximum(a.sum(axis=0, keepdims=True), 1.0))
        a_norm = a * inv_in * inv_out
        h = feats[g]
        for w, b in zip(gcn_ws, gcn_bs):
            h = a_norm @ (h @ w[g]) + b[g]
            h = jnp.where(h >= 0.0, h, NEG_SLOPE * h)
        seq.append(h)
    seq = jnp.stack(seq)                                      # (cuts, N, H)

    h = jnp.zeros((n, hsz), jnp.float32)
    for t in range(cuts):
        gi = seq[t] @ w_ih.T + b_ih
        gh = h @ w_hh.T + b_hh
        r = jax.nn.sigmoid(gi[:, :hsz] + gh[:, :hsz])
        z = jax.nn.sigmoid(gi[:, hsz:2 * hsz] + gh[:, hsz:2 * hsz])
        nn_ = jnp.tanh(gi[:, 2 * hsz:] + r * gh[:, 2 * hsz:])
        h = (1.0 - z) * nn_ + z * h
    return h


if __name__ == "__main__":
    # Small shapes implied by the forward: cuts graphs of N nodes each,
    # input_size -> hidden_size GCN stack, then GRU over the cuts axis.
    CUTS, N, IN_F, HID, LAYERS = 3, 16, 64, 128, 2

    key = jax.random.PRNGKey(0)
    keys = jax.random.split(key, 12)

    # Deterministic random graphs (dense 0/1 adjacency + self loops).
    adj = (jax.random.uniform(keys[0], (CUTS, N, N)) < 0.3).astype(jnp.float32)
    adj = jnp.maximum(adj, jnp.eye(N, dtype=jnp.float32)[None])

    feats = jax.random.normal(keys[1], (CUTS, N, IN_F), dtype=jnp.float32)

    scale = 0.1
    gcn_ws, gcn_bs = [], []
    f_in = IN_F
    for l in range(LAYERS):
        gcn_ws.append(scale * jax.random.normal(keys[2 + 2 * l],
                                                (CUTS, f_in, HID), dtype=jnp.float32))
        gcn_bs.append(scale * jax.random.normal(keys[3 + 2 * l],
                                                (CUTS, 1, HID), dtype=jnp.float32))
        f_in = HID

    w_ih = scale * jax.random.normal(keys[8], (3 * HID, HID), dtype=jnp.float32)
    w_hh = scale * jax.random.normal(keys[9], (3 * HID, HID), dtype=jnp.float32)
    b_ih = scale * jax.random.normal(keys[10], (3 * HID,), dtype=jnp.float32)
    b_hh = scale * jax.random.normal(keys[11], (3 * HID,), dtype=jnp.float32)

    out = gcn_gru_forward(adj, feats, gcn_ws, gcn_bs, w_ih, w_hh, b_ih, b_hh)
    out = jax.block_until_ready(out)

    ref = reference_forward(adj, feats, gcn_ws, gcn_bs, w_ih, w_hh, b_ih, b_hh)
    np.testing.assert_allclose(np.asarray(out), np.asarray(ref),
                               rtol=1e-4, atol=1e-4)

    print("KERNEL_OK")
</pallas_src>

<mosaic_0001>
module attributes {stable_mosaic.version = 11 : i64} {
  func.func @kernel(%arg0: i32, %arg1: memref<1x16x16xf32, #tpu.memory_space<vmem>>, %arg2: memref<1x16x64xf32, #tpu.memory_space<vmem>>, %arg3: memref<1x64x128xf32, #tpu.memory_space<vmem>>, %arg4: memref<1x128x128xf32, #tpu.memory_space<vmem>>, %arg5: memref<1x1x128xf32, #tpu.memory_space<vmem>>, %arg6: memref<1x1x128xf32, #tpu.memory_space<vmem>>, %arg7: memref<128x384xf32, #tpu.memory_space<vmem>>, %arg8: memref<1x384xf32, #tpu.memory_space<vmem>>, %arg9: memref<1x16x384xf32, #tpu.memory_space<vmem>>) attributes {dimension_semantics = [#tpu.dimension_semantics<parallel>], iteration_bounds = array<i64: 3>, scalar_prefetch = 0 : i64, scratch_operands = 0 : i64, tpu.core_type = #tpu.core_type<tc>, window_params = [{transform_indices = @transform_0, window_bounds = array<i64: 1, 16, 16>}, {transform_indices = @transform_1, window_bounds = array<i64: 1, 16, 64>}, {transform_indices = @transform_2, window_bounds = array<i64: 1, 64, 128>}, {transform_indices = @transform_3, window_bounds = array<i64: 1, 128, 128>}, {transform_indices = @transform_4, window_bounds = array<i64: 1, 1, 128>}, {transform_indices = @transform_5, window_bounds = array<i64: 1, 1, 128>}, {pipeline_mode = #tpu.pipeline_mode<synchronous>, transform_indices = @transform_6, window_bounds = array<i64: 128, 384>}, {pipeline_mode = #tpu.pipeline_mode<synchronous>, transform_indices = @transform_7, window_bounds = array<i64: 1, 384>}, {transform_indices = @transform_8, window_bounds = array<i64: 1, 16, 384>}]} {
    %c0 = arith.constant 0 : index
    %c0_0 = arith.constant 0 : index
    %c0_1 = arith.constant 0 : index
    %0 = vector.load %arg1[%c0, %c0_0, %c0_1] : memref<1x16x16xf32, #tpu.memory_space<vmem>>, vector<1x16x16xf32>
    %1 = vector.shape_cast %0 : vector<1x16x16xf32> to vector<16x16xf32>
    %cst = arith.constant dense<0.000000e+00> : vector<16xf32>
    %2 = vector.multi_reduction <add>, %1, %cst [1] : vector<16x16xf32> to vector<16xf32>
    %3 = vector.shape_cast %2 : vector<16xf32> to vector<16x1xf32>
    %cst_2 = arith.constant dense<0.000000e+00> : vector<16xf32>
    %4 = vector.multi_reduction <add>, %1, %cst_2 [0] : vector<16x16xf32> to vector<16xf32>
    %5 = vector.shape_cast %4 : vector<16xf32> to vector<1x16xf32>
    %cst_3 = arith.constant 1.000000e+00 : f32
    %6 = vector.broadcast %cst_3 : f32 to vector<16x1xf32>
    %7 = arith.maximumf %3, %6 : vector<16x1xf32>
    %8 = math.rsqrt %7 : vector<16x1xf32>
    %9 = vector.broadcast %8 : vector<16x1xf32> to vector<16x16xf32>
    %10 = arith.mulf %1, %9 : vector<16x16xf32>
    %cst_4 = arith.constant 1.000000e+00 : f32
    %11 = vector.broadcast %cst_4 : f32 to vector<1x16xf32>
    %12 = arith.maximumf %5, %11 : vector<1x16xf32>
    %13 = math.rsqrt %12 : vector<1x16xf32>
    %14 = vector.broadcast %13 : vector<1x16xf32> to vector<16x16xf32>
    %15 = arith.mulf %10, %14 : vector<16x16xf32>
    %c0_5 = arith.constant 0 : index
    %c0_6 = arith.constant 0 : index
    %c0_7 = arith.constant 0 : index
    %16 = vector.load %arg2[%c0_5, %c0_6, %c0_7] : memref<1x16x64xf32, #tpu.memory_space<vmem>>, vector<1x16x64xf32>
    %17 = vector.shape_cast %16 : vector<1x16x64xf32> to vector<16x64xf32>
    %c0_8 = arith.constant 0 : index
    %c0_9 = arith.constant 0 : index
    %c0_10 = arith.constant 0 : index
    %18 = vector.load %arg3[%c0_8, %c0_9, %c0_10] : memref<1x64x128xf32, #tpu.memory_space<vmem>>, vector<1x64x128xf32>
    %19 = vector.shape_cast %18 : vector<1x64x128xf32> to vector<64x128xf32>
    %c0_11 = arith.constant 0 : index
    %c0_12 = arith.constant 0 : index
    %c0_13 = arith.constant 0 : index
    %20 = vector.load %arg5[%c0_11, %c0_12, %c0_13] : memref<1x1x128xf32, #tpu.memory_space<vmem>>, vector<1x1x128xf32>
    %21 = vector.shape_cast %20 : vector<1x1x128xf32> to vector<1x128xf32>
    %cst_14 = arith.constant dense<0.000000e+00> : vector<16x64xf32>
    %22 = tpu.matmul %15, %17, %cst_14 {dimension_numbers = #tpu.dot_dimension_numbers<[1], [0], [0], [1], [0, 0, 1, 1], [], []>} : vector<16x16xf32>, vector<16x64xf32>, vector<16x64xf32> -> vector<16x64xf32>
    %cst_15 = arith.constant dense<0.000000e+00> : vector<16x128xf32>
    %23 = tpu.matmul %22, %19, %cst_15 {dimension_numbers = #tpu.dot_dimension_numbers<[1], [0], [0], [1], [0, 0, 1, 1], [], []>} : vector<16x64xf32>, vector<64x128xf32>, vector<16x128xf32> -> vector<16x128xf32>
    %24 = vector.broadcast %21 : vector<1x128xf32> to vector<16x128xf32>
    %25 = arith.addf %23, %24 : vector<16x128xf32>
    %cst_16 = arith.constant 0.000000e+00 : f32
    %26 = vector.broadcast %cst_16 : f32 to vector<16x128xf32>
    %27 = arith.cmpf oge, %25, %26 : vector<16x128xf32>
    %cst_17 = arith.constant 0.00999999977 : f32
    %28 = vector.broadcast %cst_17 : f32 to vector<16x128xf32>
    %29 = arith.mulf %28, %25 : vector<16x128xf32>
    %30 = arith.select %27, %25, %29 : vector<16x128xi1>, vector<16x128xf32>
    %c0_18 = arith.constant 0 : index
    %c0_19 = arith.constant 0 : index
    %c0_20 = arith.constant 0 : index
    %31 = vector.load %arg4[%c0_18, %c0_19, %c0_20] : memref<1x128x128xf32, #tpu.memory_space<vmem>>, vector<1x128x128xf32>
    %32 = vector.shape_cast %31 : vector<1x128x128xf32> to vector<128x128xf32>
    %c0_21 = arith.constant 0 : index
    %c0_22 = arith.constant 0 : index
    %c0_23 = arith.constant 0 : index
    %33 = vector.load %arg6[%c0_21, %c0_22, %c0_23] : memref<1x1x128xf32, #tpu.memory_space<vmem>>, vector<1x1x128xf32>
    %34 = vector.shape_cast %33 : vector<1x1x128xf32> to vector<1x128xf32>
    %cst_24 = arith.constant dense<0.000000e+00> : vector<16x128xf32>
    %35 = tpu.matmul %30, %32, %cst_24 {dimension_numbers = #tpu.dot_dimension_numbers<[1], [0], [0], [1], [0, 0, 1, 1], [], []>} : vector<16x128xf32>, vector<128x128xf32>, vector<16x128xf32> -> vector<16x128xf32>
    %cst_25 = arith.constant dense<0.000000e+00> : vector<16x128xf32>
    %36 = tpu.matmul %15, %35, %cst_25 {dimension_numbers = #tpu.dot_dimension_numbers<[1], [0], [0], [1], [0, 0, 1, 1], [], []>} : vector<16x16xf32>, vector<16x128xf32>, vector<16x128xf32> -> vector<16x128xf32>
    %37 = vector.broadcast %34 : vector<1x128xf32> to vector<16x128xf32>
    %38 = arith.addf %36, %37 : vector<16x128xf32>
    %cst_26 = arith.constant 0.000000e+00 : f32
    %39 = vector.broadcast %cst_26 : f32 to vector<16x128xf32>
    %40 = arith.cmpf oge, %38, %39 : vector<16x128xf32>
    %cst_27 = arith.constant 0.00999999977 : f32
    %41 = vector.broadcast %cst_27 : f32 to vector<16x128xf32>
    %42 = arith.mulf %41, %38 : vector<16x128xf32>
    %43 = arith.select %40, %38, %42 : vector<16x128xi1>, vector<16x128xf32>
    %c0_28 = arith.constant 0 : index
    %c0_29 = arith.constant 0 : index
    %44 = vector.load %arg7[%c0_28, %c0_29] : memref<128x384xf32, #tpu.memory_space<vmem>>, vector<128x384xf32>
    %cst_30 = arith.constant dense<0.000000e+00> : vector<16x384xf32>
    %45 = tpu.matmul %43, %44, %cst_30 {dimension_numbers = #tpu.dot_dimension_numbers<[1], [0], [0], [1], [0, 0, 1, 1], [], []>} : vector<16x128xf32>, vector<128x384xf32>, vector<16x384xf32> -> vector<16x384xf32>
    %c0_31 = arith.constant 0 : index
    %c0_32 = arith.constant 0 : index
    %46 = vector.load %arg8[%c0_31, %c0_32] : memref<1x384xf32, #tpu.memory_space<vmem>>, vector<1x384xf32>
    %47 = vector.broadcast %46 : vector<1x384xf32> to vector<16x384xf32>
    %48 = arith.addf %45, %47 : vector<16x384xf32>
    %c0_33 = arith.constant 0 : index
    %c0_34 = arith.constant 0 : index
    %c0_35 = arith.constant 0 : index
    %49 = vector.load %arg9[%c0_33, %c0_34, %c0_35] : memref<1x16x384xf32, #tpu.memory_space<vmem>>, vector<1x16x384xf32>
    %50 = vector.shape_cast %49 : vector<1x16x384xf32> to vector<16x384xf32>
    %51 = vector.shape_cast %48 : vector<16x384xf32> to vector<1x16x384xf32>
    tpu.vector_store %arg9[%c0_33, %c0_34, %c0_35], %51 {strides = array<i32>} : memref<1x16x384xf32, #tpu.memory_space<vmem>>, vector<1x16x384xf32>,
    return
  }
  func.func @transform_0(%arg0: i32) -> (i32, i32, i32) {
    %c0_i32 = arith.constant 0 : i32
    %c0_i32_0 = arith.constant 0 : i32
    %c0_i32_1 = arith.constant 0 : i32
    return %arg0, %c0_i32, %c0_i32_0 : i32, i32, i32
  }
  func.func @transform_1(%arg0: i32) -> (i32, i32, i32) {
    %c0_i32 = arith.constant 0 : i32
    %c0_i32_0 = arith.constant 0 : i32
    %c0_i32_1 = arith.constant 0 : i32
    return %arg0, %c0_i32, %c0_i32_0 : i32, i32, i32
  }
  func.func @transform_2(%arg0: i32) -> (i32, i32, i32) {
    %c0_i32 = arith.constant 0 : i32
    %c0_i32_0 = arith.constant 0 : i32
    %c0_i32_1 = arith.constant 0 : i32
    return %arg0, %c0_i32, %c0_i32_0 : i32, i32, i32
  }
  func.func @transform_3(%arg0: i32) -> (i32, i32, i32) {
    %c0_i32 = arith.constant 0 : i32
    %c0_i32_0 = arith.constant 0 : i32
    %c0_i32_1 = arith.constant 0 : i32
    return %arg0, %c0_i32, %c0_i32_0 : i32, i32, i32
  }
  func.func @transform_4(%arg0: i32) -> (i32, i32, i32) {
    %c0_i32 = arith.constant 0 : i32
    %c0_i32_0 = arith.constant 0 : i32
    %c0_i32_1 = arith.constant 0 : i32
    return %arg0, %c0_i32, %c0_i32_0 : i32, i32, i32
  }
  func.func @transform_5(%arg0: i32) -> (i32, i32, i32) {
    %c0_i32 = arith.constant 0 : i32
    %c0_i32_0 = arith.constant 0 : i32
    %c0_i32_1 = arith.constant 0 : i32
    return %arg0, %c0_i32, %c0_i32_0 : i32, i32, i32
  }
  func.func @transform_6(%arg0: i32) -> (i32, i32) {
    %c0_i32 = arith.constant 0 : i32
    %c0_i32_0 = arith.constant 0 : i32
    %c0_i32_1 = arith.constant 0 : i32
    return %c0_i32, %c0_i32_0 : i32, i32
  }
  func.func @transform_7(%arg0: i32) -> (i32, i32) {
    %c0_i32 = arith.constant 0 : i32
    %c0_i32_0 = arith.constant 0 : i32
    %c0_i32_1 = arith.constant 0 : i32
    return %c0_i32, %c0_i32_0 : i32, i32
  }
  func.func @transform_8(%arg0: i32) -> (i32, i32, i32) {
    %c0_i32 = arith.constant 0 : i32
    %c0_i32_0 = arith.constant 0 : i32
    %c0_i32_1 = arith.constant 0 : i32
    return %arg0, %c0_i32, %c0_i32_0 : i32, i32, i32
  }
}

</mosaic_0001>

<llo_original>
// kernel: tpu_custom_call.1
$region0: #{tpu_custom_call.1}
  #allocation0 [shape = 'u32[]', space=smem, size = 0x4, offset = 0x4, fixed_abs, tag = 'smem constant byte address 0x4 - core index']
  #allocation1 [shape = 'u32[144,128]{1,0:T(1,128)}', space=vmem, size = 0x12000, scoped, tag = 'internal scratch']
  %s0 = inlined_call_operand.hbm [shape: f32[3,16,16], index: 0, kind: input, shape index: {}]
  %s1 = inlined_call_operand.hbm [shape: f32[3,16,64], index: 1, kind: input, shape index: {}]
  %s2 = inlined_call_operand.hbm [shape: f32[3,64,128], index: 2, kind: input, shape index: {}]
  %s3 = inlined_call_operand.hbm [shape: f32[3,128,128], index: 3, kind: input, shape index: {}]
  %s4 = inlined_call_operand.vmem [shape: f32[3,1,128], index: 4, kind: input, shape index: {}]
  %s5 = inlined_call_operand.vmem [shape: f32[3,1,128], index: 5, kind: input, shape index: {}]
  %s6 = inlined_call_operand.hbm [shape: f32[128,384], index: 6, kind: input, shape index: {}]
  %s7 = inlined_call_operand.vmem [shape: f32[1,384], index: 7, kind: input, shape index: {}]
  %s8 = inlined_call_operand.hbm [shape: f32[3,16,384], index: 8, kind: output, shape index: {}]
  %s9 = sld [smem:[#allocation0]]
  $region85: #{tpu_custom_call.1} parent=0
    _
  %s11 = ssub.s32 1, %s9
  %s12 = scalar_select 0, %s11, %s9
  $region1: #{tpu_custom_call.1} parent=0
    #allocation2 [shape = 'u8[16384]{0}', space=vmem, size = 0x4000, scoped, tag = 'input window, operand 0']
    #allocation3 [shape = 's32[2]{0}', space=sflag, size = 0x8, scoped, tag = 'scoped memory for tpu_custom_call.1']
    #allocation4 [shape = 's32[2]{0}', space=sflag, size = 0x8, scoped, tag = 'scoped memory for tpu_custom_call.1']
    #allocation5 [shape = 'u8[16384]{0}', space=vmem, size = 0x4000, scoped, tag = 'input window, operand 1']
    #allocation6 [shape = 's32[2]{0}', space=sflag, size = 0x8, scoped, tag = 'scoped memory for tpu_custom_call.1']
    #allocation7 [shape = 'u8[65536]{0}', space=vmem, size = 0x10000, scoped, tag = 'input window, operand 2']
    #allocation8 [shape = 'u8[131072]{0}', space=vmem, size = 0x20000, scoped, tag = 'input window, operand 3']
    #allocation9 [shape = 's32[2]{0}', space=sflag, size = 0x8, scoped, tag = 'scoped memory for tpu_custom_call.1']
    #allocation10 [shape = 'u8[196608]{0}', space=vmem, size = 0x30000, scoped, tag = 'input window, operand 6, single buffered']
    #allocation11 [shape = 'u8[49152]{0}', space=vmem, size = 0xc000, scoped, tag = 'output window, operand 0']
    %13 = vsyncpa [#allocation3], 0
    %s14 = scalar_lea.sflag [#allocation3], 1
    %15 = vsyncpa %s14, 0
    %16 = vsyncpa [#allocation6], 0
    %s17 = scalar_lea.sflag [#allocation6], 1
    %18 = vsyncpa %s17, 0
    %19 = vsyncpa [#allocation9], 0
    %s20 = scalar_lea.sflag [#allocation9], 1
    %21 = vsyncpa %s20, 0
    %22 = vsyncpa [#allocation4], 0
    %s23 = scalar_lea.sflag [#allocation4], 1
    %24 = vsyncpa %s23, 0
    loop: start=0, step=1, limit=5
    $region2: #{tpu_custom_call.1} parent=1 // loop_pre_header
      _
    $region3: #{tpu_custom_call.1} parent=1 // loop_header
      %s26 = sphi 0, %s30
      %p27 = scmp.ge.s32.totalorder %s26, 5
      %s36 = sphi 0, %s38
      %s39 = sphi 0, %s36
      %s40 = sphi 0, %s39
      %s56 = sphi 0, %s40
      %s62 = sphi 0, %s64
      %s65 = sphi 0, %s62
      %s66 = sphi 0, %s65
      %s82 = sphi 0, %s66
      %s88 = sphi 0, %s90
      %s91 = sphi 0, %s88
      %s92 = sphi 0, %s91
      %s108 = sphi 0, %s92
      %s114 = sphi 0, %s116
      %s117 = sphi 0, %s114
      %s118 = sphi 0, %s117
      %s134 = sphi 0, %s118
      %s140 = sphi 0, %s142
      %s143 = sphi 0, %s140
      %s144 = sphi 0, %s143
      %s160 = sphi 0, %s144
      %s166 = sphi 0, %s168
      %s169 = sphi 0, %s166
      %s170 = sphi 0, %s169
      %s186 = sphi 0, %s170
      %s190 = sphi 0, %s190
      %s192 = sphi 0, %s190
      %s193 = sphi 0, %s192
      %s207 = sphi 0, %s193
      %s211 = sphi 0, %s211
      %s213 = sphi 0, %s211
      %s214 = sphi 0, %s213
      %s228 = sphi 0, %s214
      %s234 = sphi 0, %s236
      %s237 = sphi 0, %s234
      %s238 = sphi 0, %s237
      %s254 = sphi 0, %s238
    $region4: #{tpu_custom_call.1} parent=1 // loop_header_branch
      %29 = sbr.rel (%p27) target = $region8
    $region5: #{tpu_custom_call.1} parent=1 // loop_body
      %s31 = ssub.s32 %s26, 1
      %s32 = ssub.s32 %s26, 2
      %s33 = sadd.s32 %s26, 1
      %s34 = ssub.s32 %s26, %s33
      %p35 = scmp.eq.s32.totalorder %s34, 0
      %s37 = sadd.s32 %s36, 1
      %s38 = scalar_select %p35, %s36, %s37
      %p41 = pneg %p35
      %p42 = scmp.eq.s32.totalorder %s26, 2
      %p43 = por %p41, %p42
      %p44 = scmp.ne.s32.totalorder %s36, %s39
      %p45 = scmp.eq.s32.totalorder %s26, 0
      %p46 = por %p44, %p45
      %p47 = scmp.ne.s32.totalorder %s36, %s39
      %p48 = scmp.eq.s32.totalorder %s31, 2
      %p49 = por %p47, %p48
      %p50 = scmp.ne.s32.totalorder %s39, %s40
      %p51 = scmp.eq.s32.totalorder %s31, 0
      %p52 = por %p50, %p51
      %p53 = scmp.ne.s32.totalorder %s39, %s40
      %p54 = scmp.eq.s32.totalorder %s32, 2
      %p55 = por %p53, %p54
      %p57 = scmp.ne.s32.totalorder %s40, %s56
      %p58 = scmp.eq.s32.totalorder %s32, 0
      %p59 = por %p57, %p58
      %s60 = ssub.s32 %s26, %s33
      %p61 = scmp.eq.s32.totalorder %s60, 0
      %s63 = sadd.s32 %s62, 1
      %s64 = scalar_select %p61, %s62, %s63
      %p67 = pneg %p61
      %p68 = scmp.eq.s32.totalorder %s26, 2
      %p69 = por %p67, %p68
      %p70 = scmp.ne.s32.totalorder %s62, %s65
      %p71 = scmp.eq.s32.totalorder %s26, 0
      %p72 = por %p70, %p71
      %p73 = scmp.ne.s32.totalorder %s62, %s65
      %p74 = scmp.eq.s32.totalorder %s31, 2
      %p75 = por %p73, %p74
      %p76 = scmp.ne.s32.totalorder %s65, %s66
      %p77 = scmp.eq.s32.totalorder %s31, 0
      %p78 = por %p76, %p77
      %p79 = scmp.ne.s32.totalorder %s65, %s66
      %p80 = scmp.eq.s32.totalorder %s32, 2
      %p81 = por %p79, %p80
      %p83 = scmp.ne.s32.totalorder %s66, %s82
      %p84 = scmp.eq.s32.totalorder %s32, 0
      %p85 = por %p83, %p84
      %s86 = ssub.s32 %s26, %s33
      %p87 = scmp.eq.s32.totalorder %s86, 0
      %s89 = sadd.s32 %s88, 1
      %s90 = scalar_select %p87, %s88, %s89
      %p93 = pneg %p87
      %p94 = scmp.eq.s32.totalorder %s26, 2
      %p95 = por %p93, %p94
      %p96 = scmp.ne.s32.totalorder %s88, %s91
      %p97 = scmp.eq.s32.totalorder %s26, 0
      %p98 = por %p96, %p97
      %p99 = scmp.ne.s32.totalorder %s88, %s91
      %p100 = scmp.eq.s32.totalorder %s31, 2
      %p101 = por %p99, %p100
      %p102 = scmp.ne.s32.totalorder %s91, %s92
      %p103 = scmp.eq.s32.totalorder %s31, 0
      %p104 = por %p102, %p103
      %p105 = scmp.ne.s32.totalorder %s91, %s92
      %p106 = scmp.eq.s32.totalorder %s32, 2
      %p107 = por %p105, %p106
      %p109 = scmp.ne.s32.totalorder %s92, %s108
      %p110 = scmp.eq.s32.totalorder %s32, 0
      %p111 = por %p109, %p110
      %s112 = ssub.s32 %s26, %s33
      %p113 = scmp.eq.s32.totalorder %s112, 0
      %s115 = sadd.s32 %s114, 1
      %s116 = scalar_select %p113, %s114, %s115
      %p119 = pneg %p113
      %p120 = scmp.eq.s32.totalorder %s26, 2
      %p121 = por %p119, %p120
      %p122 = scmp.ne.s32.totalorder %s114, %s117
      %p123 = scmp.eq.s32.totalorder %s26, 0
      %p124 = por %p122, %p123
      %p125 = scmp.ne.s32.totalorder %s114, %s117
      %p126 = scmp.eq.s32.totalorder %s31, 2
      %p127 = por %p125, %p126
      %p128 = scmp.ne.s32.totalorder %s117, %s118
      %p129 = scmp.eq.s32.totalorder %s31, 0
      %p130 = por %p128, %p129
      %p131 = scmp.ne.s32.totalorder %s117, %s118
      %p132 = scmp.eq.s32.totalorder %s32, 2
      %p133 = por %p131, %p132
      %p135 = scmp.ne.s32.totalorder %s118, %s134
      %p136 = scmp.eq.s32.totalorder %s32, 0
      %p137 = por %p135, %p136
      %s138 = ssub.s32 %s26, %s33
      %p139 = scmp.eq.s32.totalorder %s138, 0
      %s141 = sadd.s32 %s140, 1
      %s142 = scalar_select %p139, %s140, %s141
      %p145 = pneg %p139
      %p146 = scmp.eq.s32.totalorder %s26, 2
      %p147 = por %p145, %p146
      %p148 = scmp.ne.s32.totalorder %s140, %s143
      %p149 = scmp.eq.s32.totalorder %s26, 0
      %p150 = por %p148, %p149
      %p151 = scmp.ne.s32.totalorder %s140, %s143
      %p152 = scmp.eq.s32.totalorder %s31, 2
      %p153 = por %p151, %p152
      %p154 = scmp.ne.s32.totalorder %s143, %s144
      %p155 = scmp.eq.s32.totalorder %s31, 0
      %p156 = por %p154, %p155
      %p157 = scmp.ne.s32.totalorder %s143, %s144
      %p158 = scmp.eq.s32.totalorder %s32, 2
      %p159 = por %p157, %p158
      %p161 = scmp.ne.s32.totalorder %s144, %s160
      %p162 = scmp.eq.s32.totalorder %s32, 0
      %p163 = por %p161, %p162
      %s164 = ssub.s32 %s26, %s33
      %p165 = scmp.eq.s32.totalorder %s164, 0
      %s167 = sadd.s32 %s166, 1
      %s168 = scalar_select %p165, %s166, %s167
      %p171 = pneg %p165
      %p172 = scmp.eq.s32.totalorder %s26, 2
      %p173 = por %p171, %p172
      %p174 = scmp.ne.s32.totalorder %s166, %s169
      %p175 = scmp.eq.s32.totalorder %s26, 0
      %p176 = por %p174, %p175
      %p177 = scmp.ne.s32.totalorder %s166, %s169
      %p178 = scmp.eq.s32.totalorder %s31, 2
      %p179 = por %p177, %p178
      %p180 = scmp.ne.s32.totalorder %s169, %s170
      %p181 = scmp.eq.s32.totalorder %s31, 0
      %p182 = por %p180, %p181
      %p183 = scmp.ne.s32.totalorder %s169, %s170
      %p184 = scmp.eq.s32.totalorder %s32, 2
      %p185 = por %p183, %p184
      %p187 = scmp.ne.s32.totalorder %s170, %s186
      %p188 = scmp.eq.s32.totalorder %s32, 0
      %p189 = por %p187, %p188
      %s191 = sadd.s32 %s190, 1
      %p194 = scmp.eq.s32.totalorder %s26, 2
      %p195 = scmp.ne.s32.totalorder %s190, %s192
      %p196 = scmp.eq.s32.totalorder %s26, 0
      %p197 = por %p195, %p196
      %p198 = scmp.ne.s32.totalorder %s190, %s192
      %p199 = scmp.eq.s32.totalorder %s31, 2
      %p200 = por %p198, %p199
      %p201 = scmp.ne.s32.totalorder %s192, %s193
      %p202 = scmp.eq.s32.totalorder %s31, 0
      %p203 = por %p201, %p202
      %p204 = scmp.ne.s32.totalorder %s192, %s193
      %p205 = scmp.eq.s32.totalorder %s32, 2
      %p206 = por %p204, %p205
      %p208 = scmp.ne.s32.totalorder %s193, %s207
      %p209 = scmp.eq.s32.totalorder %s32, 0
      %p210 = por %p208, %p209
      %s212 = sadd.s32 %s211, 1
      %p215 = scmp.eq.s32.totalorder %s26, 2
      %p216 = scmp.ne.s32.totalorder %s211, %s213
      %p217 = scmp.eq.s32.totalorder %s26, 0
      %p218 = por %p216, %p217
      %p219 = scmp.ne.s32.totalorder %s211, %s213
      %p220 = scmp.eq.s32.totalorder %s31, 2
      %p221 = por %p219, %p220
      %p222 = scmp.ne.s32.totalorder %s213, %s214
      %p223 = scmp.eq.s32.totalorder %s31, 0
      %p224 = por %p222, %p223
      %p225 = scmp.ne.s32.totalorder %s213, %s214
      %p226 = scmp.eq.s32.totalorder %s32, 2
      %p227 = por %p225, %p226
      %p229 = scmp.ne.s32.totalorder %s214, %s228
      %p230 = scmp.eq.s32.totalorder %s32, 0
      %p231 = por %p229, %p230
      %s232 = ssub.s32 %s26, %s33
      %p233 = scmp.eq.s32.totalorder %s232, 0
      %s235 = sadd.s32 %s234, 1
      %s236 = scalar_select %p233, %s234, %s235
      %p239 = pneg %p233
      %p240 = scmp.eq.s32.totalorder %s26, 2
      %p241 = por %p239, %p240
      %p242 = scmp.ne.s32.totalorder %s234, %s237
      %p243 = scmp.eq.s32.totalorder %s26, 0
      %p244 = por %p242, %p243
      %p245 = scmp.ne.s32.totalorder %s234, %s237
      %p246 = scmp.eq.s32.totalorder %s31, 2
      %p247 = por %p245, %p246
      %p248 = scmp.ne.s32.totalorder %s237, %s238
      %p249 = scmp.eq.s32.totalorder %s31, 0
      %p250 = por %p248, %p249
      %p251 = scmp.ne.s32.totalorder %s237, %s238
      %p252 = scmp.eq.s32.totalorder %s32, 2
      %p253 = por %p251, %p252
      %p255 = scmp.ne.s32.totalorder %s238, %s254
      %p256 = scmp.eq.s32.totalorder %s32, 0
      %p257 = por %p255, %p256
      %p258 = scmp.le.s32.totalorder 1, %s26
      %p259 = scmp.lt.s32.totalorder %s26, 4
      %p260 = pnand %p258, %p259
      %p261 = pneg %p260
      // Predicated region
      $region9: #{tpu_custom_call.1} parent=5 // pred_check
        _
      $region10: #{tpu_custom_call.1} parent=5 // pred_check_branch
        %263 = sbr.rel (%p260) target = $region12
      $region11: #{tpu_custom_call.1} parent=5 // pred_region
        %s264 = ssub.s32 %s26, 1
        // Predicated region
        $region13: #{tpu_custom_call.1} parent=11 // pred_check
          %p265 = pneg %p203
        $region14: #{tpu_custom_call.1} parent=11 // pred_check_branch
          %267 = sbr.rel (%p265) target = $region16
        $region15: #{tpu_custom_call.1} parent=11 // pred_region
          %s269 = ssub.s32 6144, 6144
          %270 = vsyncadd [#allocation9], %s269
          %s271 = sshll.u32 [#allocation10], 4
          %s272 = int_to_ptr.vmem [resolvable:$true] %s271
          %277 = dma.hbm_to_vmem [thread:$0]  %s6, 6144, %s272, [#allocation9], 384, 384, 24
        $region16: #{tpu_custom_call.1} parent=11 // pred_fallthru
          _
        // Predicated region
        $region17: #{tpu_custom_call.1} parent=11 // pred_check
          %p278 = pneg %p224
        $region18: #{tpu_custom_call.1} parent=11 // pred_check_branch
          %280 = sbr.rel (%p278) target = $region20
        $region19: #{tpu_custom_call.1} parent=11 // pred_region
          _
        $region20: #{tpu_custom_call.1} parent=11 // pred_fallthru
          _
      $region12: #{tpu_custom_call.1} parent=5 // pred_fallthru
        _
      %p281 = scmp.lt.s32.totalorder %s26, 3
      // Predicated region
      $region21: #{tpu_custom_call.1} parent=5 // pred_check
        %p282 = pneg %p281
      $region22: #{tpu_custom_call.1} parent=5 // pred_check_branch
        %284 = sbr.rel (%p282) target = $region24
      $region23: #{tpu_custom_call.1} parent=5 // pred_region
        // Predicated region
        $region25: #{tpu_custom_call.1} parent=23 // pred_check
          %p285 = pneg %p46
        $region26: #{tpu_custom_call.1} parent=23 // pred_check_branch
          %287 = sbr.rel (%p285) target = $region28
        $region27: #{tpu_custom_call.1} parent=23 // pred_region
          %s288 = sand.u32 %s36, 1
          %s289 = scalar_lea.sflag [#allocation3], %s288
          %s290 = sand.u32 %s36, 1
          %s291 = smul.addr %s290, 16
          %s292 = scalar_lea.vmem [#allocation2], %s291
          %s294 = ssub.s32 256, 256
          %295 = vsyncadd %s289, %s294
          %s296 = smul.addr %s26, 2
          %s297 = smul.addr %s296, 128
          %s298 = scalar_lea.hbm %s0, %s297
          %s299 = sshll.u32 %s292, 4
          %s300 = int_to_ptr.vmem [resolvable:$true] %s299
          %305 = dma.hbm_to_vmem [thread:$0]  %s298, 256, %s300, %s289, 128, 128, 8
        $region28: #{tpu_custom_call.1} parent=23 // pred_fallthru
          _
        // Predicated region
        $region29: #{tpu_custom_call.1} parent=23 // pred_check
          %p306 = pneg %p72
        $region30: #{tpu_custom_call.1} parent=23 // pred_check_branch
          %308 = sbr.rel (%p306) target = $region32
        $region31: #{tpu_custom_call.1} parent=23 // pred_region
          %s309 = sand.u32 %s26, 1
          %s310 = scalar_lea.sflag [#allocation6], %s309
          %s311 = sand.u32 %s62, 1
          %s312 = smul.addr %s311, 16
          %s313 = scalar_lea.vmem [#allocation5], %s312
          %s315 = ssub.s32 256, 256
          %316 = vsyncadd %s310, %s315
          %s317 = smul.addr %s26, 2
          %s318 = smul.addr %s317, 128
          %s319 = scalar_lea.hbm %s1, %s318
          %s320 = sshll.u32 %s313, 4
          %s321 = int_to_ptr.vmem [resolvable:$true] %s320
          %326 = dma.hbm_to_vmem [thread:$0]  %s319, 256, %s321, %s310, 128, 128, 8
        $region32: #{tpu_custom_call.1} parent=23 // pred_fallthru
          _
        // Predicated region
        $region33: #{tpu_custom_call.1} parent=23 // pred_check
          %p327 = pneg %p98
        $region34: #{tpu_custom_call.1} parent=23 // pred_check_branch
          %329 = sbr.rel (%p327) target = $region36
        $region35: #{tpu_custom_call.1} parent=23 // pred_region
          %s330 = sand.u32 %s26, 1
          %s331 = scalar_lea.sflag [#allocation6], %s330
          %s332 = sand.u32 %s88, 1
          %s333 = smul.addr %s332, 64
          %s334 = scalar_lea.vmem [#allocation7], %s333
          %s336 = ssub.s32 1024, 1024
          %337 = vsyncadd %s331, %s336
          %s338 = smul.addr %s26, 8
          %s339 = smul.addr %s338, 128
          %s340 = scalar_lea.hbm %s2, %s339
          %s341 = sshll.u32 %s334, 4
          %s342 = int_to_ptr.vmem [resolvable:$true] %s341
          %347 = dma.hbm_to_vmem [thread:$0]  %s340, 1024, %s342, %s331, 128, 128, 8
        $region36: #{tpu_custom_call.1} parent=23 // pred_fallthru
          _
        // Predicated region
        $region37: #{tpu_custom_call.1} parent=23 // pred_check
          %p348 = pneg %p124
        $region38: #{tpu_custom_call.1} parent=23 // pred_check_branch
          %350 = sbr.rel (%p348) target = $region40
        $region39: #{tpu_custom_call.1} parent=23 // pred_region
          %s351 = sand.u32 %s26, 1
          %s352 = scalar_lea.sflag [#allocation9], %s351
          %s353 = sand.u32 %s114, 1
          %s354 = smul.addr %s353, 128
          %s355 = scalar_lea.vmem [#allocation8], %s354
          %s357 = ssub.s32 2048, 2048
          %358 = vsyncadd %s352, %s357
          %s359 = smul.addr %s26, 16
          %s360 = smul.addr %s359, 128
          %s361 = scalar_lea.hbm %s3, %s360
          %s362 = sshll.u32 %s355, 4
          %s363 = int_to_ptr.vmem [resolvable:$true] %s362
          %368 = dma.hbm_to_vmem [thread:$0]  %s361, 2048, %s363, %s352, 128, 128, 8
        $region40: #{tpu_custom_call.1} parent=23 // pred_fallthru
          _
        // Predicated region
        $region41: #{tpu_custom_call.1} parent=23 // pred_check
          %p369 = pneg %p150
        $region42: #{tpu_custom_call.1} parent=23 // pred_check_branch
          %371 = sbr.rel (%p369) target = $region44
        $region43: #{tpu_custom_call.1} parent=23 // pred_region
          %p372 = scmp.lt.s32.totalorder %s26, 2
          %s373 = scalar_select %p372, %s26, 2
          %s374 = scalar_lea.vmem %s4, %s373
        $region44: #{tpu_custom_call.1} parent=23 // pred_fallthru
          _
        // Predicated region
        $region45: #{tpu_custom_call.1} parent=23 // pred_check
          %p375 = pneg %p176
        $region46: #{tpu_custom_call.1} parent=23 // pred_check_branch
          %377 = sbr.rel (%p375) target = $region48
        $region47: #{tpu_custom_call.1} parent=23 // pred_region
          %p378 = scmp.lt.s32.totalorder %s26, 2
          %s379 = scalar_select %p378, %s26, 2
          %s380 = scalar_lea.vmem %s5, %s379
        $region48: #{tpu_custom_call.1} parent=23 // pred_fallthru
          _
      $region24: #{tpu_custom_call.1} parent=5 // pred_fallthru
        _
      %p381 = scmp.le.s32.totalorder 1, %s26
      %p382 = scmp.lt.s32.totalorder %s26, 4
      %p383 = pnand %p381, %p382
      %p384 = pneg %p383
      // Predicated region
      $region49: #{tpu_custom_call.1} parent=5 // pred_check
        _
      $region50: #{tpu_custom_call.1} parent=5 // pred_check_branch
        %386 = sbr.rel (%p383) target = $region52
      $region51: #{tpu_custom_call.1} parent=5 // pred_region
        %s387 = ssub.s32 %s26, 1
        %s388 = sand.u32 %s39, 1
        %s389 = scalar_lea.sflag [#allocation3], %s388
        %s390 = sand.u32 %s39, 1
        %s391 = smul.addr %s390, 16
        %s392 = scalar_lea.vmem [#allocation2], %s391
        // Predicated region
        $region53: #{tpu_custom_call.1} parent=51 // pred_check
          %p393 = pneg %p52
        $region54: #{tpu_custom_call.1} parent=51 // pred_check_branch
          %395 = sbr.rel (%p393) target = $region56
        $region55: #{tpu_custom_call.1} parent=51 // pred_region
          %396 = dma.done %s389, 256
        $region56: #{tpu_custom_call.1} parent=51 // pred_fallthru
          _
        %s397 = sand.u32 %s31, 1
        %s398 = scalar_lea.sflag [#allocation6], %s397
        %s399 = sand.u32 %s65, 1
        %s400 = smul.addr %s399, 16
        %s401 = scalar_lea.vmem [#allocation5], %s400
        // Predicated region
        $region57: #{tpu_custom_call.1} parent=51 // pred_check
          %p402 = pneg %p78
        $region58: #{tpu_custom_call.1} parent=51 // pred_check_branch
          %404 = sbr.rel (%p402) target = $region60
        $region59: #{tpu_custom_call.1} parent=51 // pred_region
          %405 = dma.done %s398, 256
        $region60: #{tpu_custom_call.1} parent=51 // pred_fallthru
          _
        %s406 = sand.u32 %s31, 1
        %s407 = scalar_lea.sflag [#allocation6], %s406
        %s408 = sand.u32 %s91, 1
        %s409 = smul.addr %s408, 64
        %s410 = scalar_lea.vmem [#allocation7], %s409
        // Predicated region
        $region61: #{tpu_custom_call.1} parent=51 // pred_check
          %p411 = pneg %p104
        $region62: #{tpu_custom_call.1} parent=51 // pred_check_branch
          %413 = sbr.rel (%p411) target = $region64
        $region63: #{tpu_custom_call.1} parent=51 // pred_region
          %414 = dma.done %s407, 1024
        $region64: #{tpu_custom_call.1} parent=51 // pred_fallthru
          _
        %s415 = sand.u32 %s31, 1
        %s416 = scalar_lea.sflag [#allocation9], %s415
        %s417 = sand.u32 %s117, 1
        %s418 = smul.addr %s417, 128
        %s419 = scalar_lea.vmem [#allocation8], %s418
        // Predicated region
        $region65: #{tpu_custom_call.1} parent=51 // pred_check
          %p420 = pneg %p130
        $region66: #{tpu_custom_call.1} parent=51 // pred_check_branch
          %422 = sbr.rel (%p420) target = $region68
        $region67: #{tpu_custom_call.1} parent=51 // pred_region
          %423 = dma.done %s416, 2048
        $region68: #{tpu_custom_call.1} parent=51 // pred_fallthru
          _
        // Predicated region
        $region69: #{tpu_custom_call.1} parent=51 // pred_check
          %p424 = pneg %p203
        $region70: #{tpu_custom_call.1} parent=51 // pred_check_branch
          %426 = sbr.rel (%p424) target = $region72
        $region71: #{tpu_custom_call.1} parent=51 // pred_region
          %427 = dma.done [#allocation9], 6144
        $region72: #{tpu_custom_call.1} parent=51 // pred_fallthru
          _
        %s428 = sand.u32 %s39, 1
        %s429 = scalar_lea.sflag [#allocation3], %s428
        %s430 = sand.u32 %s39, 1
        %s431 = smul.addr %s430, 16
        %s432 = scalar_lea.vmem [#allocation2], %s431
        %p433 = pneg %p52
        %p434 = pneg %p49
        %s435 = sand.u32 %s31, 1
        %s436 = scalar_lea.sflag [#allocation6], %s435
        %s437 = sand.u32 %s65, 1
        %s438 = smul.addr %s437, 16
        %s439 = scalar_lea.vmem [#allocation5], %s438
        %p440 = pneg %p78
        %p441 = pneg %p75
        %s442 = sand.u32 %s31, 1
        %s443 = scalar_lea.sflag [#allocation6], %s442
        %s444 = sand.u32 %s91, 1
        %s445 = smul.addr %s444, 64
        %s446 = scalar_lea.vmem [#allocation7], %s445
        %p447 = pneg %p104
        %p448 = pneg %p101
        %s449 = sand.u32 %s31, 1
        %s450 = scalar_lea.sflag [#allocation9], %s449
        %s451 = sand.u32 %s117, 1
        %s452 = smul.addr %s451, 128
        %s453 = scalar_lea.vmem [#allocation8], %s452
        %p454 = pneg %p130
        %p455 = pneg %p127
        %p456 = scmp.lt.s32.totalorder %s31, 2
        %s457 = scalar_select %p456, %s31, 2
        %s458 = scalar_lea.vmem %s4, %s457
        %p459 = pneg %p156
        %p460 = pneg %p153
        %p461 = scmp.lt.s32.totalorder %s31, 2
        %s462 = scalar_select %p461, %s31, 2
        %s463 = scalar_lea.vmem %s5, %s462
        %p464 = pneg %p182
        %p465 = pneg %p179
        %p466 = pneg %p203
        %p467 = pneg %p200
        %p468 = pneg %p224
        %p469 = pneg %p221
        %p470 = pneg %p250
        %p471 = pneg %p247
        %s472 = sand.u32 %s237, 1
        %s473 = scalar_lea.sflag [#allocation4], %s472
        %s474 = sand.u32 %s237, 1
        %s475 = smul.addr %s474, 48
        %s476 = scalar_lea.vmem [#allocation11], %s475
        %p477 = scmp.lt.s32.totalorder %s31, 2
        %s478 = scalar_select %p477, %s31, 2
        %s479 = scalar_lea.vmem %s4, %s478
        %p480 = scmp.lt.s32.totalorder %s31, 2
        %s481 = scalar_select %p480, %s31, 2
        %s482 = scalar_lea.vmem %s5, %s481
        %v483 = vld [vmem:[%s392] sm:$0xff]
        %v484 = vld [vmem:[%s392 + $0x8] sm:$0xff]
        %vm485 = vcmask 130048
        %v486 = vsel %vm485, %v483, 0.0
        %487 = vadd.xlane.f32.xlu0 %v486
        %v488 = vpop.xlane.xlu0 %487
        %v489 = vsel %vm485, %v484, 0.0
        %490 = vadd.xlane.f32.xlu0 %v489
        %v491 = vpop.xlane.xlu0 %490
        %v492 = vadd.f32 %v486, %v489
        %v493 = vrot.slane %v492, 4
        %v494 = vadd.f32 %v492, %v493
        %v495 = vrot.slane %v494, 2
        %v496 = vadd.f32 %v494, %v495
        %v497 = vrot.slane %v496, 1
        %v498 = vadd.f32 %v496, %v497
        %v499 = vmax.f32 %v488, 1.0
        %v500 = vmax.f32 %v491, 1.0
        %v501 = vrsqrt.pop %v499
        %v502 = vrsqrt.pop %v500
        %v503 = vmul.f32 %v483, %v501
        %v504 = vmul.f32 %v484, %v502
        %v505 = vmax.f32 %v498, 1.0
        %v506 = vrsqrt.pop %v505
        %v507 = vmul.f32 %v503, %v506
        %v508 = vmul.f32 %v504, %v506
        %v509 = vld [vmem:[%s401] sm:$0xff]
        %v510 = vld [vmem:[%s401 + $0x8] sm:$0xff]
        %v511 = vld [vmem:[%s410] sm:$0xff]
        %v512 = vld [vmem:[%s410 + $0x8] sm:$0xff]
        %v513 = vld [vmem:[%s410 + $0x10] sm:$0xff]
        %v514 = vld [vmem:[%s410 + $0x18] sm:$0xff]
        %v515 = vld [vmem:[%s410 + $0x20] sm:$0xff]
        %v516 = vld [vmem:[%s410 + $0x28] sm:$0xff]
        %v517 = vld [vmem:[%s410 + $0x30] sm:$0xff]
        %v518 = vld [vmem:[%s410 + $0x38] sm:$0xff]
        %v519 = vld [vmem:[%s479] sm:$0x1]
        %v521 = vsel %vm485, %v507, 0
        %v524 = vsel %vm485, %v508, 0
        %526 = vmatprep.subr.mxu0 0.0
        %527 = vmatpush1.msra.mxu0 0.0
        %528 = vmatprep.subr.mxu0 0.0
        %529 = vmatpush1.msra.mxu0 0.0
        %530 = vmatprep.subr.mxu0 0.0
        %531 = vmatpush1.msra.mxu0 0.0
        %532 = vmatprep.subr.mxu0 0.0
        %533 = vmatpush1.msra.mxu0 0.0
        %534 = vmatprep.subr.mxu0 0.0
        %535 = vmatpush1.msra.mxu0 0.0
        %536 = vmatprep.subr.mxu0 0.0
        %537 = vmatpush1.msra.mxu0 0.0
        %538 = vmatprep.subr.mxu0 0.0
        %539 = vmatpush1.msra.mxu0 0.0
        %540 = vmatprep.subr.mxu0 0.0
        %541 = vmatpush1.msra.mxu0 0.0
        %542 = vmatprep.subr.mxu0 0.0
        %543 = vmatpush1.msra.mxu0 0.0
        %544 = vmatprep.subr.mxu0 0.0
        %545 = vmatpush1.msra.mxu0 0.0
        %546 = vmatprep.subr.mxu0 0.0
        %547 = vmatpush1.msra.mxu0 0.0
        %548 = vmatprep.subr.mxu0 0.0
        %549 = vmatpush1.msra.mxu0 0.0
        %550 = vmatprep.subr.mxu0 0.0
        %551 = vmatpush1.msra.mxu0 0.0
        %552 = vmatprep.subr.mxu0 0.0
        %553 = vmatpush1.msra.mxu0 0.0
        %554 = vmatprep.subr.mxu0 0.0
        %555 = vmatpush1.msra.mxu0 %v510
        %556 = vmatprep.subr.mxu0 0.0
        %557 = vmatpush1.msra.mxu0 %v509
        %558 = vmatprep.subr.mxu0 0.0
        %559 = vmatpush2.msra.mxu0 0.0
        %560 = vmatprep.subr.mxu0 0.0
        %561 = vmatpush2.msra.mxu0 0.0
        %562 = vmatprep.subr.mxu0 0.0
        %563 = vmatpush2.msra.mxu0 0.0
        %564 = vmatprep.subr.mxu0 0.0
        %565 = vmatpush2.msra.mxu0 0.0
        %566 = vmatprep.subr.mxu0 0.0
        %567 = vmatpush2.msra.mxu0 0.0
        %568 = vmatprep.subr.mxu0 0.0
        %569 = vmatpush2.msra.mxu0 0.0
        %570 = vmatprep.subr.mxu0 0.0
        %571 = vmatpush2.msra.mxu0 0.0
        %572 = vmatprep.subr.mxu0 0.0
        %573 = vmatpush2.msra.mxu0 0.0
        %574 = vmatprep.subr.mxu0 0.0
        %575 = vmatpush2.msra.mxu0 0.0
        %576 = vmatprep.subr.mxu0 0.0
        %577 = vmatpush2.msra.mxu0 0.0
        %578 = vmatprep.subr.mxu0 0.0
        %579 = vmatpush2.msra.mxu0 0.0
        %580 = vmatprep.subr.mxu0 0.0
        %581 = vmatpush2.msra.mxu0 0.0
        %582 = vmatprep.subr.mxu0 0.0
        %583 = vmatpush2.msra.mxu0 0.0
        %584 = vmatprep.subr.mxu0 0.0
        %585 = vmatpush2.msra.mxu0 0.0
        %586 = vmatprep.subr.mxu0 0.0
        %587 = vmatpush2.msra.mxu0 0.0
        %588 = vmatprep.subr.mxu0 0.0
        %589 = vmatpush2.msra.mxu0 0.0
        %590 = vmatprep.mubr.f32.mxu0 0.0
        %591 = vmatmul.mubr.f32.gmra.mxu0 %v521
        %v592 = vpop.f32.mrf.mxu0
        %v593 = vadd.f32 0.0, %v592
        %v594 = vpop.f32.mrf.mxu0
        %595 = vmatprep.mubr.f32.mxu0 0.0
        %596 = vmatmul.mubr.f32.gmra.mxu0 %v524
        %v597 = vpop.f32.mrf.mxu0
        %v598 = vadd.f32 0.0, %v597
        %v599 = vpop.f32.mrf.mxu0
        %600 = vdwg.mxu0
        %v602 = vlaneseq
        %v603 = vshrl.u32 %v602, 7
        %v604 = vsub.s32 0, %v603
        %v605 = vrot.slane %v519, %v604
        %vm607 = vcmask 523264
        %v609 = vsel %vm607, %v593, 0
        %v612 = vsel %vm607, %v598, 0
        %614 = vmatprep.subr.mxu0 0.0
        %615 = vmatpush1.msra.mxu0 0.0
        %616 = vmatprep.subr.mxu0 0.0
        %617 = vmatpush1.msra.mxu0 0.0
        %618 = vmatprep.subr.mxu0 0.0
        %619 = vmatpush1.msra.mxu0 0.0
        %620 = vmatprep.subr.mxu0 0.0
        %621 = vmatpush1.msra.mxu0 0.0
        %622 = vmatprep.subr.mxu0 0.0
        %623 = vmatpush1.msra.mxu0 0.0
        %624 = vmatprep.subr.mxu0 0.0
        %625 = vmatpush1.msra.mxu0 0.0
        %626 = vmatprep.subr.mxu0 0.0
        %627 = vmatpush1.msra.mxu0 0.0
        %628 = vmatprep.subr.mxu0 0.0
        %629 = vmatpush1.msra.mxu0 0.0
        %630 = vmatprep.subr.mxu0 0.0
        %631 = vmatpush1.msra.mxu0 %v518
        %632 = vmatprep.subr.mxu0 0.0
        %633 = vmatpush1.msra.mxu0 %v517
        %634 = vmatprep.subr.mxu0 0.0
        %635 = vmatpush1.msra.mxu0 %v516
        %636 = vmatprep.subr.mxu0 0.0
        %637 = vmatpush1.msra.mxu0 %v515
        %638 = vmatprep.subr.mxu0 0.0
        %639 = vmatpush1.msra.mxu0 %v514
        %640 = vmatprep.subr.mxu0 0.0
        %641 = vmatpush1.msra.mxu0 %v513
        %642 = vmatprep.subr.mxu0 0.0
        %643 = vmatpush1.msra.mxu0 %v512
        %644 = vmatprep.subr.mxu0 0.0
        %645 = vmatpush1.msra.mxu0 %v511
        %646 = vmatprep.subr.mxu0 0.0
        %647 = vmatpush2.msra.mxu0 0.0
        %648 = vmatprep.subr.mxu0 0.0
        %649 = vmatpush2.msra.mxu0 0.0
        %650 = vmatprep.subr.mxu0 0.0
        %651 = vmatpush2.msra.mxu0 0.0
        %652 = vmatprep.subr.mxu0 0.0
        %653 = vmatpush2.msra.mxu0 0.0
        %654 = vmatprep.subr.mxu0 0.0
        %655 = vmatpush2.msra.mxu0 0.0
        %656 = vmatprep.subr.mxu0 0.0
        %657 = vmatpush2.msra.mxu0 0.0
        %658 = vmatprep.subr.mxu0 0.0
        %659 = vmatpush2.msra.mxu0 0.0
        %660 = vmatprep.subr.mxu0 0.0
        %661 = vmatpush2.msra.mxu0 0.0
        %662 = vmatprep.subr.mxu0 0.0
        %663 = vmatpush2.msra.mxu0 0.0
        %664 = vmatprep.subr.mxu0 0.0
        %665 = vmatpush2.msra.mxu0 0.0
        %666 = vmatprep.subr.mxu0 0.0
        %667 = vmatpush2.msra.mxu0 0.0
        %668 = vmatprep.subr.mxu0 0.0
        %669 = vmatpush2.msra.mxu0 0.0
        %670 = vmatprep.subr.mxu0 0.0
        %671 = vmatpush2.msra.mxu0 0.0
        %672 = vmatprep.subr.mxu0 0.0
        %673 = vmatpush2.msra.mxu0 0.0
        %674 = vmatprep.subr.mxu0 0.0
        %675 = vmatpush2.msra.mxu0 0.0
        %676 = vmatprep.subr.mxu0 0.0
        %677 = vmatpush2.msra.mxu0 0.0
        %678 = vmatprep.mubr.f32.mxu0 0.0
        %679 = vmatmul.mubr.f32.gmra.mxu0 %v609
        %v680 = vpop.f32.mrf.mxu0
        %v681 = vadd.f32 %v605, %v680
        %v682 = vpop.f32.mrf.mxu0
        %683 = vmatprep.mubr.f32.mxu0 0.0
        %684 = vmatmul.mubr.f32.gmra.mxu0 %v612
        %v685 = vpop.f32.mrf.mxu0
        %v686 = vadd.f32 %v605, %v685
        %v687 = vpop.f32.mrf.mxu0
        %688 = vdwg.mxu0
        %vm689 = vcmp.ge.f32.partialorder %v681, 0.0
        %vm690 = vcmp.ge.f32.partialorder %v686, 0.0
        %v691 = vmul.f32 %v681, 0.01
        %v692 = vmul.f32 %v686, 0.01
        %v693 = vsel %vm689, %v681, %v691
        %v694 = vsel %vm690, %v686, %v692
        %v695 = vld [vmem:[%s419] sm:$0xff]
        %v696 = vld [vmem:[%s419 + $0x8] sm:$0xff]
        %v697 = vld [vmem:[%s419 + $0x10] sm:$0xff]
        %v698 = vld [vmem:[%s419 + $0x18] sm:$0xff]
        %v699 = vld [vmem:[%s419 + $0x20] sm:$0xff]
        %v700 = vld [vmem:[%s419 + $0x28] sm:$0xff]
        %v701 = vld [vmem:[%s419 + $0x30] sm:$0xff]
        %v702 = vld [vmem:[%s419 + $0x38] sm:$0xff]
        %v703 = vld [vmem:[%s419 + $0x40] sm:$0xff]
        %v704 = vld [vmem:[%s419 + $0x48] sm:$0xff]
        %v705 = vld [vmem:[%s419 + $0x50] sm:$0xff]
        %v706 = vld [vmem:[%s419 + $0x58] sm:$0xff]
        %v707 = vld [vmem:[%s419 + $0x60] sm:$0xff]
        %v708 = vld [vmem:[%s419 + $0x68] sm:$0xff]
        %v709 = vld [vmem:[%s419 + $0x70] sm:$0xff]
        %v710 = vld [vmem:[%s419 + $0x78] sm:$0xff]
        %v711 = vld [vmem:[%s482] sm:$0x1]
        %712 = vmatprep.subr.mxu0 0.0
        %713 = vmatpush1.msra.mxu0 %v710
        %714 = vmatprep.subr.mxu0 0.0
        %715 = vmatpush1.msra.mxu0 %v709
        %716 = vmatprep.subr.mxu0 0.0
        %717 = vmatpush1.msra.mxu0 %v708
        %718 = vmatprep.subr.mxu0 0.0
        %719 = vmatpush1.msra.mxu0 %v707
        %720 = vmatprep.subr.mxu0 0.0
        %721 = vmatpush1.msra.mxu0 %v706
        %722 = vmatprep.subr.mxu0 0.0
        %723 = vmatpush1.msra.mxu0 %v705
        %724 = vmatprep.subr.mxu0 0.0
        %725 = vmatpush1.msra.mxu0 %v704
        %726 = vmatprep.subr.mxu0 0.0
        %727 = vmatpush1.msra.mxu0 %v703
        %728 = vmatprep.subr.mxu0 0.0
        %729 = vmatpush1.msra.mxu0 %v702
        %730 = vmatprep.subr.mxu0 0.0
        %731 = vmatpush1.msra.mxu0 %v701
        %732 = vmatprep.subr.mxu0 0.0
        %733 = vmatpush1.msra.mxu0 %v700
        %734 = vmatprep.subr.mxu0 0.0
        %735 = vmatpush1.msra.mxu0 %v699
        %736 = vmatprep.subr.mxu0 0.0
        %737 = vmatpush1.msra.mxu0 %v698
        %738 = vmatprep.subr.mxu0 0.0
        %739 = vmatpush1.msra.mxu0 %v697
        %740 = vmatprep.subr.mxu0 0.0
        %741 = vmatpush1.msra.mxu0 %v696
        %742 = vmatprep.subr.mxu0 0.0
        %743 = vmatpush1.msra.mxu0 %v695
        %744 = vmatprep.subr.mxu0 0.0
        %745 = vmatpush2.msra.mxu0 0.0
        %746 = vmatprep.subr.mxu0 0.0
        %747 = vmatpush2.msra.mxu0 0.0
        %748 = vmatprep.subr.mxu0 0.0
        %749 = vmatpush2.msra.mxu0 0.0
        %750 = vmatprep.subr.mxu0 0.0
        %751 = vmatpush2.msra.mxu0 0.0
        %752 = vmatprep.subr.mxu0 0.0
        %753 = vmatpush2.msra.mxu0 0.0
        %754 = vmatprep.subr.mxu0 0.0
        %755 = vmatpush2.msra.mxu0 0.0
        %756 = vmatprep.subr.mxu0 0.0
        %757 = vmatpush2.msra.mxu0 0.0
        %758 = vmatprep.subr.mxu0 0.0
        %759 = vmatpush2.msra.mxu0 0.0
        %760 = vmatprep.subr.mxu0 0.0
        %761 = vmatpush2.msra.mxu0 0.0
        %762 = vmatprep.subr.mxu0 0.0
        %763 = vmatpush2.msra.mxu0 0.0
        %764 = vmatprep.subr.mxu0 0.0
        %765 = vmatpush2.msra.mxu0 0.0
        %766 = vmatprep.subr.mxu0 0.0
        %767 = vmatpush2.msra.mxu0 0.0
        %768 = vmatprep.subr.mxu0 0.0
        %769 = vmatpush2.msra.mxu0 0.0
        %770 = vmatprep.subr.mxu0 0.0
        %771 = vmatpush2.msra.mxu0 0.0
        %772 = vmatprep.subr.mxu0 0.0
        %773 = vmatpush2.msra.mxu0 0.0
        %774 = vmatprep.subr.mxu0 0.0
        %775 = vmatpush2.msra.mxu0 0.0
        %776 = vmatprep.mubr.f32.mxu0 0.0
        %777 = vmatmul.mubr.f32.gmra.mxu0 %v693
        %v778 = vpop.f32.mrf.mxu0
        %v779 = vadd.f32 0.0, %v778
        %v780 = vpop.f32.mrf.mxu0
        %781 = vmatprep.mubr.f32.mxu0 0.0
        %782 = vmatmul.mubr.f32.gmra.mxu0 %v694
        %v783 = vpop.f32.mrf.mxu0
        %v784 = vadd.f32 0.0, %v783
        %v785 = vpop.f32.mrf.mxu0
        %786 = vdwg.mxu0
        %v788 = vlaneseq
        %v789 = vshrl.u32 %v788, 7
        %v790 = vsub.s32 0, %v789
        %v791 = vrot.slane %v711, %v790
        %793 = vmatprep.subr.mxu0 0.0
        %794 = vmatpush1.msra.mxu0 0.0
        %795 = vmatprep.subr.mxu0 0.0
        %796 = vmatpush1.msra.mxu0 0.0
        %797 = vmatprep.subr.mxu0 0.0
        %798 = vmatpush1.msra.mxu0 0.0
        %799 = vmatprep.subr.mxu0 0.0
        %800 = vmatpush1.msra.mxu0 0.0
        %801 = vmatprep.subr.mxu0 0.0
        %802 = vmatpush1.msra.mxu0 0.0
        %803 = vmatprep.subr.mxu0 0.0
        %804 = vmatpush1.msra.mxu0 0.0
        %805 = vmatprep.subr.mxu0 0.0
        %806 = vmatpush1.msra.mxu0 0.0
        %807 = vmatprep.subr.mxu0 0.0
        %808 = vmatpush1.msra.mxu0 0.0
        %809 = vmatprep.subr.mxu0 0.0
        %810 = vmatpush1.msra.mxu0 0.0
        %811 = vmatprep.subr.mxu0 0.0
        %812 = vmatpush1.msra.mxu0 0.0
        %813 = vmatprep.subr.mxu0 0.0
        %814 = vmatpush1.msra.mxu0 0.0
        %815 = vmatprep.subr.mxu0 0.0
        %816 = vmatpush1.msra.mxu0 0.0
        %817 = vmatprep.subr.mxu0 0.0
        %818 = vmatpush1.msra.mxu0 0.0
        %819 = vmatprep.subr.mxu0 0.0
        %820 = vmatpush1.msra.mxu0 0.0
        %821 = vmatprep.subr.mxu0 0.0
        %822 = vmatpush1.msra.mxu0 %v784
        %823 = vmatprep.subr.mxu0 0.0
        %824 = vmatpush1.msra.mxu0 %v779
        %825 = vmatprep.subr.mxu0 0.0
        %826 = vmatpush2.msra.mxu0 0.0
        %827 = vmatprep.subr.mxu0 0.0
        %828 = vmatpush2.msra.mxu0 0.0
        %829 = vmatprep.subr.mxu0 0.0
        %830 = vmatpush2.msra.mxu0 0.0
        %831 = vmatprep.subr.mxu0 0.0
        %832 = vmatpush2.msra.mxu0 0.0
        %833 = vmatprep.subr.mxu0 0.0
        %834 = vmatpush2.msra.mxu0 0.0
        %835 = vmatprep.subr.mxu0 0.0
        %836 = vmatpush2.msra.mxu0 0.0
        %837 = vmatprep.subr.mxu0 0.0
        %838 = vmatpush2.msra.mxu0 0.0
        %839 = vmatprep.subr.mxu0 0.0
        %840 = vmatpush2.msra.mxu0 0.0
        %841 = vmatprep.subr.mxu0 0.0
        %842 = vmatpush2.msra.mxu0 0.0
        %843 = vmatprep.subr.mxu0 0.0
        %844 = vmatpush2.msra.mxu0 0.0
        %845 = vmatprep.subr.mxu0 0.0
        %846 = vmatpush2.msra.mxu0 0.0
        %847 = vmatprep.subr.mxu0 0.0
        %848 = vmatpush2.msra.mxu0 0.0
        %849 = vmatprep.subr.mxu0 0.0
        %850 = vmatpush2.msra.mxu0 0.0
        %851 = vmatprep.subr.mxu0 0.0
        %852 = vmatpush2.msra.mxu0 0.0
        %853 = vmatprep.subr.mxu0 0.0
        %854 = vmatpush2.msra.mxu0 0.0
        %855 = vmatprep.subr.mxu0 0.0
        %856 = vmatpush2.msra.mxu0 0.0
        %857 = vmatprep.mubr.f32.mxu0 0.0
        %858 = vmatmul.mubr.f32.gmra.mxu0 %v521
        %v859 = vpop.f32.mrf.mxu0
        %v860 = vadd.f32 %v791, %v859
        %v861 = vpop.f32.mrf.mxu0
        %862 = vmatprep.mubr.f32.mxu0 0.0
        %863 = vmatmul.mubr.f32.gmra.mxu0 %v524
        %v864 = vpop.f32.mrf.mxu0
        %v865 = vadd.f32 %v791, %v864
        %v866 = vpop.f32.mrf.mxu0
        %867 = vdwg.mxu0
        %vm868 = vcmp.ge.f32.partialorder %v860, 0.0
        %vm869 = vcmp.ge.f32.partialorder %v865, 0.0
        %v870 = vmul.f32 %v860, 0.01
        %v871 = vmul.f32 %v865, 0.01
        %v872 = vsel %vm868, %v860, %v870
        %v873 = vsel %vm869, %v865, %v871
        %v874 = vld [vmem:[#allocation10] sm:$0xff]
        %v875 = vld [vmem:[#allocation10 + $0x8] sm:$0xff]
        %v876 = vld [vmem:[#allocation10 + $0x10] sm:$0xff]
        %v877 = vld [vmem:[#allocation10 + $0x18] sm:$0xff]
        %v878 = vld [vmem:[#allocation10 + $0x20] sm:$0xff]
        %v879 = vld [vmem:[#allocation10 + $0x28] sm:$0xff]
        %v880 = vld [vmem:[#allocation10 + $0x30] sm:$0xff]
        %v881 = vld [vmem:[#allocation10 + $0x38] sm:$0xff]
        %v882 = vld [vmem:[#allocation10 + $0x40] sm:$0xff]
        %v883 = vld [vmem:[#allocation10 + $0x48] sm:$0xff]
        %v884 = vld [vmem:[#allocation10 + $0x50] sm:$0xff]
        %v885 = vld [vmem:[#allocation10 + $0x58] sm:$0xff]
        %v886 = vld [vmem:[#allocation10 + $0x60] sm:$0xff]
        %v887 = vld [vmem:[#allocation10 + $0x68] sm:$0xff]
        %v888 = vld [vmem:[#allocation10 + $0x70] sm:$0xff]
        %v889 = vld [vmem:[#allocation10 + $0x78] sm:$0xff]
        %v890 = vld [vmem:[#allocation10 + $0x80] sm:$0xff]
        %v891 = vld [vmem:[#allocation10 + $0x88] sm:$0xff]
        %v892 = vld [vmem:[#allocation10 + $0x90] sm:$0xff]
        %v893 = vld [vmem:[#allocation10 + $0x98] sm:$0xff]
        %v894 = vld [vmem:[#allocation10 + $0xa0] sm:$0xff]
        %v895 = vld [vmem:[#allocation10 + $0xa8] sm:$0xff]
        %v896 = vld [vmem:[#allocation10 + $0xb0] sm:$0xff]
        %v897 = vld [vmem:[#allocation10 + $0xb8] sm:$0xff]
        %v898 = vld [vmem:[#allocation10 + $0xc0] sm:$0xff]
        %v899 = vld [vmem:[#allocation10 + $0xc8] sm:$0xff]
        %v900 = vld [vmem:[#allocation10 + $0xd0] sm:$0xff]
        %v901 = vld [vmem:[#allocation10 + $0xd8] sm:$0xff]
        %v902 = vld [vmem:[#allocation10 + $0xe0] sm:$0xff]
        %v903 = vld [vmem:[#allocation10 + $0xe8] sm:$0xff]
        %v904 = vld [vmem:[#allocation10 + $0xf0] sm:$0xff]
        %v905 = vld [vmem:[#allocation10 + $0xf8] sm:$0xff]
        %v906 = vld [vmem:[#allocation10 + $0x100] sm:$0xff]
        %v907 = vld [vmem:[#allocation10 + $0x108] sm:$0xff]
        %v908 = vld [vmem:[#allocation10 + $0x110] sm:$0xff]
        %v909 = vld [vmem:[#allocation10 + $0x118] sm:$0xff]
        %v910 = vld [vmem:[#allocation10 + $0x120] sm:$0xff]
        %v911 = vld [vmem:[#allocation10 + $0x128] sm:$0xff]
        %v912 = vld [vmem:[#allocation10 + $0x130] sm:$0xff]
        %v913 = vld [vmem:[#allocation10 + $0x138] sm:$0xff]
        %v914 = vld [vmem:[#allocation10 + $0x140] sm:$0xff]
        %v915 = vld [vmem:[#allocation10 + $0x148] sm:$0xff]
        %v916 = vld [vmem:[#allocation10 + $0x150] sm:$0xff]
        %v917 = vld [vmem:[#allocation10 + $0x158] sm:$0xff]
        %v918 = vld [vmem:[#allocation10 + $0x160] sm:$0xff]
        %v919 = vld [vmem:[#allocation10 + $0x168] sm:$0xff]
        %v920 = vld [vmem:[#allocation10 + $0x170] sm:$0xff]
        %v921 = vld [vmem:[#allocation10 + $0x178] sm:$0xff]
        %v922 = vld [vmem:[%s7] sm:$0x7]
        %v924 = vlaneseq
        %v925 = vshrl.u32 %v924, 7
        %v926 = vsub.s32 0, %v925
        %v927 = vrot.slane %v922, %v926
        %v928 = vlaneseq
        %v929 = vshrl.u32 %v928, 7
        %v930 = vsub.s32 1, %v929
        %v931 = vrot.slane %v922, %v930
        %v932 = vlaneseq
        %v933 = vshrl.u32 %v932, 7
        %v934 = vsub.s32 2, %v933
        %v935 = vrot.slane %v922, %v934
        %939 = vmatprep.subr.mxu0 %v920
        %940 = vmatpush1.msra.mxu0 %v919
        %941 = vmatprep.subr.mxu0 %v917
        %942 = vmatpush1.msra.mxu0 %v916
        %943 = vmatprep.subr.mxu0 %v914
        %944 = vmatpush1.msra.mxu0 %v913
        %945 = vmatprep.subr.mxu0 %v911
        %946 = vmatpush1.msra.mxu0 %v910
        %947 = vmatprep.subr.mxu0 %v908
        %948 = vmatpush1.msra.mxu0 %v907
        %949 = vmatprep.subr.mxu0 %v905
        %950 = vmatpush1.msra.mxu0 %v904
        %951 = vmatprep.subr.mxu0 %v902
        %952 = vmatpush1.msra.mxu0 %v901
        %953 = vmatprep.subr.mxu0 %v899
        %954 = vmatpush1.msra.mxu0 %v898
        %955 = vmatprep.subr.mxu0 %v896
        %956 = vmatpush1.msra.mxu0 %v895
        %957 = vmatprep.subr.mxu0 %v893
        %958 = vmatpush1.msra.mxu0 %v892
        %959 = vmatprep.subr.mxu0 %v890
        %960 = vmatpush1.msra.mxu0 %v889
        %961 = vmatprep.subr.mxu0 %v887
        %962 = vmatpush1.msra.mxu0 %v886
        %963 = vmatprep.subr.mxu0 %v884
        %964 = vmatpush1.msra.mxu0 %v883
        %965 = vmatprep.subr.mxu0 %v881
        %966 = vmatpush1.msra.mxu0 %v880
        %967 = vmatprep.subr.mxu0 %v878
        %968 = vmatpush1.msra.mxu0 %v877
        %969 = vmatprep.subr.mxu0 %v875
        %970 = vmatpush1.msra.mxu0 %v874
        %971 = vmatprep.subr.mxu0 0.0
        %972 = vmatpush2.msra.mxu0 0.0
        %973 = vmatprep.subr.mxu0 0.0
        %974 = vmatpush2.msra.mxu0 0.0
        %975 = vmatprep.subr.mxu0 0.0
        %976 = vmatpush2.msra.mxu0 0.0
        %977 = vmatprep.subr.mxu0 0.0
        %978 = vmatpush2.msra.mxu0 0.0
        %979 = vmatprep.subr.mxu0 0.0
        %980 = vmatpush2.msra.mxu0 0.0
        %981 = vmatprep.subr.mxu0 0.0
        %982 = vmatpush2.msra.mxu0 0.0
        %983 = vmatprep.subr.mxu0 0.0
        %984 = vmatpush2.msra.mxu0 0.0
        %985 = vmatprep.subr.mxu0 0.0
        %986 = vmatpush2.msra.mxu0 0.0
        %987 = vmatprep.subr.mxu0 0.0
        %988 = vmatpush2.msra.mxu0 0.0
        %989 = vmatprep.subr.mxu0 0.0
        %990 = vmatpush2.msra.mxu0 0.0
        %991 = vmatprep.subr.mxu0 0.0
        %992 = vmatpush2.msra.mxu0 0.0
        %993 = vmatprep.subr.mxu0 0.0
        %994 = vmatpush2.msra.mxu0 0.0
        %995 = vmatprep.subr.mxu0 0.0
        %996 = vmatpush2.msra.mxu0 0.0
        %997 = vmatprep.subr.mxu0 0.0
        %998 = vmatpush2.msra.mxu0 0.0
        %999 = vmatprep.subr.mxu0 0.0
        %1000 = vmatpush2.msra.mxu0 0.0
        %1001 = vmatprep.subr.mxu0 0.0
        %1002 = vmatpush2.msra.mxu0 0.0
        %1003 = vmatprep.mubr.f32.mxu0 0.0
        %1004 = vmatmul.mubr.f32.gmra.mxu0 %v872
        %v1005 = vpop.f32.mrf.mxu0
        %v1006 = vadd.f32 %v927, %v1005
        %v1007 = vpop.f32.mrf.mxu0
        %v1008 = vadd.f32 %v931, %v1007
        %1009 = vmatprep.mubr.f32.mxu0 0.0
        %1010 = vmatmul.mubr.f32.gmra.mxu0 %v873
        %v1011 = vpop.f32.mrf.mxu0
        %v1012 = vadd.f32 %v927, %v1011
        %v1013 = vpop.f32.mrf.mxu0
        %v1014 = vadd.f32 %v931, %v1013
        %1015 = vdwg.mxu0
        %1016 = vmatprep.subr.mxu0 0.0
        %1017 = vmatpush1.msra.mxu0 %v921
        %1018 = vmatprep.subr.mxu0 0.0
        %1019 = vmatpush1.msra.mxu0 %v918
        %1020 = vmatprep.subr.mxu0 0.0
        %1021 = vmatpush1.msra.mxu0 %v915
        %1022 = vmatprep.subr.mxu0 0.0
        %1023 = vmatpush1.msra.mxu0 %v912
        %1024 = vmatprep.subr.mxu0 0.0
        %1025 = vmatpush1.msra.mxu0 %v909
        %1026 = vmatprep.subr.mxu0 0.0
        %1027 = vmatpush1.msra.mxu0 %v906
        %1028 = vmatprep.subr.mxu0 0.0
        %1029 = vmatpush1.msra.mxu0 %v903
        %1030 = vmatprep.subr.mxu0 0.0
        %1031 = vmatpush1.msra.mxu0 %v900
        %1032 = vmatprep.subr.mxu0 0.0
        %1033 = vmatpush1.msra.mxu0 %v897
        %1034 = vmatprep.subr.mxu0 0.0
        %1035 = vmatpush1.msra.mxu0 %v894
        %1036 = vmatprep.subr.mxu0 0.0
        %1037 = vmatpush1.msra.mxu0 %v891
        %1038 = vmatprep.subr.mxu0 0.0
        %1039 = vmatpush1.msra.mxu0 %v888
        %1040 = vmatprep.subr.mxu0 0.0
        %1041 = vmatpush1.msra.mxu0 %v885
        %1042 = vmatprep.subr.mxu0 0.0
        %1043 = vmatpush1.msra.mxu0 %v882
        %1044 = vmatprep.subr.mxu0 0.0
        %1045 = vmatpush1.msra.mxu0 %v879
        %1046 = vmatprep.subr.mxu0 0.0
        %1047 = vmatpush1.msra.mxu0 %v876
        %1048 = vmatprep.subr.mxu0 0.0
        %1049 = vmatpush2.msra.mxu0 0.0
        %1050 = vmatprep.subr.mxu0 0.0
        %1051 = vmatpush2.msra.mxu0 0.0
        %1052 = vmatprep.subr.mxu0 0.0
        %1053 = vmatpush2.msra.mxu0 0.0
        %1054 = vmatprep.subr.mxu0 0.0
        %1055 = vmatpush2.msra.mxu0 0.0
        %1056 = vmatprep.subr.mxu0 0.0
        %1057 = vmatpush2.msra.mxu0 0.0
        %1058 = vmatprep.subr.mxu0 0.0
        %1059 = vmatpush2.msra.mxu0 0.0
        %1060 = vmatprep.subr.mxu0 0.0
        %1061 = vmatpush2.msra.mxu0 0.0
        %1062 = vmatprep.subr.mxu0 0.0
        %1063 = vmatpush2.msra.mxu0 0.0
        %1064 = vmatprep.subr.mxu0 0.0
        %1065 = vmatpush2.msra.mxu0 0.0
        %1066 = vmatprep.subr.mxu0 0.0
        %1067 = vmatpush2.msra.mxu0 0.0
        %1068 = vmatprep.subr.mxu0 0.0
        %1069 = vmatpush2.msra.mxu0 0.0
        %1070 = vmatprep.subr.mxu0 0.0
        %1071 = vmatpush2.msra.mxu0 0.0
        %1072 = vmatprep.subr.mxu0 0.0
        %1073 = vmatpush2.msra.mxu0 0.0
        %1074 = vmatprep.subr.mxu0 0.0
        %1075 = vmatpush2.msra.mxu0 0.0
        %1076 = vmatprep.subr.mxu0 0.0
        %1077 = vmatpush2.msra.mxu0 0.0
        %1078 = vmatprep.subr.mxu0 0.0
        %1079 = vmatpush2.msra.mxu0 0.0
        %1080 = vmatprep.mubr.f32.mxu0 0.0
        %1081 = vmatmul.mubr.f32.gmra.mxu0 %v872
        %v1082 = vpop.f32.mrf.mxu0
        %v1083 = vadd.f32 %v935, %v1082
        %v1084 = vpop.f32.mrf.mxu0
        %1085 = vmatprep.mubr.f32.mxu0 0.0
        %1086 = vmatmul.mubr.f32.gmra.mxu0 %v873
        %v1087 = vpop.f32.mrf.mxu0
        %v1088 = vadd.f32 %v935, %v1087
        %v1089 = vpop.f32.mrf.mxu0
        %1090 = vdwg.mxu0
        %1091 = vst [vmem:[%s476] sm:$0xff] %v1006
        %1092 = vst [vmem:[%s476 + $0x8] sm:$0xff] %v1008
        %1093 = vst [vmem:[%s476 + $0x10] sm:$0xff] %v1083
        %1094 = vst [vmem:[%s476 + $0x18] sm:$0xff] %v1012
        %1095 = vst [vmem:[%s476 + $0x20] sm:$0xff] %v1014
        %1096 = vst [vmem:[%s476 + $0x28] sm:$0xff] %v1088
        %s1097 = sand.u32 %s237, 1
        %s1098 = scalar_lea.sflag [#allocation4], %s1097
        %s1099 = sand.u32 %s237, 1
        %s1100 = smul.addr %s1099, 48
        %s1101 = scalar_lea.vmem [#allocation11], %s1100
        // Predicated region
        $region73: #{tpu_custom_call.1} parent=51 // pred_check
          %p1102 = pneg %p247
        $region74: #{tpu_custom_call.1} parent=51 // pred_check_branch
          %1104 = sbr.rel (%p1102) target = $region76
        $region75: #{tpu_custom_call.1} parent=51 // pred_region
          %s1106 = ssub.s32 768, 768
          %1107 = vsyncadd %s1098, %s1106
          %s1108 = smul.addr %s31, 6
          %s1109 = smul.addr %s1108, 128
          %s1110 = scalar_lea.hbm %s8, %s1109
          %s1111 = sshll.u32 %s1101, 4
          %s1112 = int_to_ptr.vmem [resolvable:$true] %s1111
          %1117 = dma.vmem_to_hbm [thread:$0]  %s1112, 768, %s1110, %s1098, 384, 384, 24
        $region76: #{tpu_custom_call.1} parent=51 // pred_fallthru
          _
      $region52: #{tpu_custom_call.1} parent=5 // pred_fallthru
        _
      %p1118 = scmp.le.s32.totalorder 2, %s26
      // Predicated region
      $region77: #{tpu_custom_call.1} parent=5 // pred_check
        %p1119 = pneg %p1118
      $region78: #{tpu_custom_call.1} parent=5 // pred_check_branch
        %1121 = sbr.rel (%p1119) target = $region80
      $region79: #{tpu_custom_call.1} parent=5 // pred_region
        %s1122 = ssub.s32 %s26, 2
        // Predicated region
        $region81: #{tpu_custom_call.1} parent=79 // pred_check
          %p1123 = pneg %p253
        $region82: #{tpu_custom_call.1} parent=79 // pred_check_branch
          %1125 = sbr.rel (%p1123) target = $region84
        $region83: #{tpu_custom_call.1} parent=79 // pred_region
          %s1126 = sand.u32 %s238, 1
          %s1127 = scalar_lea.sflag [#allocation4], %s1126
          %s1128 = sand.u32 %s238, 1
          %s1129 = smul.addr %s1128, 48
          %s1130 = scalar_lea.vmem [#allocation11], %s1129
          %1131 = dma.done %s1127, 768
        $region84: #{tpu_custom_call.1} parent=79 // pred_fallthru
          _
      $region80: #{tpu_custom_call.1} parent=5 // pred_fallthru
        _
    $region6: #{tpu_custom_call.1} parent=1 // loop_footer
      %s30 = sadd.s32 1, %s26
    $region7: #{tpu_custom_call.1} parent=1 // loop_footer_branch
      %25 = sbr.rel target = $region3
    $region8: #{tpu_custom_call.1} parent=1 // loop_exit
      _
    %1132 = vsyncpa [#allocation3], 1
    %s1133 = scalar_lea.sflag [#allocation3], 1
    %1134 = vsyncpa %s1133, 1
    %1135 = vsyncpa [#allocation6], 1
    %s1136 = scalar_lea.sflag [#allocation6], 1
    %1137 = vsyncpa %s1136, 1
    %1138 = vsyncpa [#allocation9], 1
    %s1139 = scalar_lea.sflag [#allocation9], 1
    %1140 = vsyncpa %s1139, 1
    %1141 = vsyncpa [#allocation4], 1
    %s1142 = scalar_lea.sflag [#allocation4], 1
    %1143 = vsyncpa %s1142, 1

</llo_original>
